<compile_context>
chip_gen: v6e
topology: v6e:2x2x1
jax: 0.10.0
libtpu: 0.0.40
codegen_flags: <defaults>
</compile_context>

<pallas_src>
import jax
import jax.numpy as jnp
from jax.experimental import pallas as pl
from jax.experimental.pallas import tpu as pltpu


def linear_kernel(x_ref, w_ref, b_ref, o_ref):
    # x_ref: (tm, K), w_ref: (K, tn), b_ref: (1, tn) -> o_ref: (tm, tn)
    o_ref[...] = (
        jnp.dot(x_ref[...], w_ref[...], preferred_element_type=jnp.float32)
        + b_ref[...]
    ).astype(o_ref.dtype)


def _round_up(v, m):
    return ((v + m - 1) // m) * m


# Conservative scoped-VMEM budget for the kernel working set; with the 32 MiB
# limit below this double-buffers cleanly on v5e / v6e / v7x.
_VMEM_BUDGET_BYTES = 20 * 1024 * 1024
_VMEM_LIMIT_BYTES = 32 * 1024 * 1024


def _tile_bytes(tm, K, tn, itemsize):
    # Factor 2 = double-buffering on every operand (conservative: W/bias with a
    # constant block index are not re-fetched, but may still be 2-buffered).
    return 2 * itemsize * (tm * K + K * tn + tm * tn + tn)


def mlp_forward(x, w, b, *, tm_cap=512, compute_dtype=None):
    """y = x @ w + b via Pallas.

    x: [B, K] (K = 256 for this module), w: [K, C], b: [C] -> y: [B, C]

    compute_dtype: optionally cast x/w (e.g. to jnp.bfloat16) to halve HBM
    traffic in the memory-bound regime; accumulation, bias and output stay f32.
    Default None preserves exact f32 semantics of the PyTorch module.
    """
    B, K = x.shape
    K2, C = w.shape
    assert K == K2 and b.shape == (C,)
    out_dtype = x.dtype
    itemsize = jnp.dtype(compute_dtype or x.dtype).itemsize

    # Minimal alignment padding only: B -> multiple of 8 (sublane), C -> multiple
    # of 128 (lane).  (In a real model the weight/bias padding is a one-off at
    # init; it is tiny here.)
    Bp = _round_up(B, 8)
    Cp = _round_up(C, 128)
    xp = x if Bp == B else jnp.pad(x, ((0, Bp - B), (0, 0)))
    wp = w if Cp == C else jnp.pad(w, ((0, 0), (0, Cp - C)))
    bp = b if Cp == C else jnp.pad(b, (0, Cp - C))
    if compute_dtype is not None:
        xp = xp.astype(compute_dtype)
        wp = wp.astype(compute_dtype)
    b2d = bp.reshape(1, Cp).astype(jnp.float32)

    # Batch tile: largest multiple of 8 dividing Bp, capped at tm_cap, and
    # additionally capped at Bp//2 when the batch is big enough so the batch
    # ("parallel") axis has >= 2 grid steps -> both v7x TensorCores get work.
    cap = tm_cap
    if Bp >= 16:
        cap = min(cap, Bp // 2)
    cap = max(8, (cap // 8) * 8)
    tm = 8
    for cand in range(cap, 7, -8):
        if Bp % cand == 0:
            tm = cand
            break

    # Class tile: keep the whole (K, Cp) weight resident in VMEM whenever it
    # fits the budget (single inner step -> x streamed from HBM exactly once).
    # Fallback for very large num_classes tiles C in multiples of 256 (full
    # v6e/v7x MXU width), 128 as a last resort.
    tn = Cp
    if _tile_bytes(tm, K, tn, itemsize) > _VMEM_BUDGET_BYTES:
        tn = 128
        for cand in (2048, 1024, 512, 256):
            if Cp % cand == 0 and _tile_bytes(tm, K, cand, itemsize) <= _VMEM_BUDGET_BYTES:
                tn = cand
                break

    grid = (Bp // tm, Cp // tn)  # batch outer; class axis is 1 step when tn == Cp
    n_i, n_j = grid

    cost = pl.CostEstimate(
        flops=2 * Bp * K * Cp,
        transcendentals=0,
        bytes_accessed=(
            itemsize * Bp * K                                    # x streamed once
            + itemsize * K * Cp * (1 if n_j == 1 else n_i)       # W resident / re-read
            + 4 * Cp                                             # bias
            + 4 * Bp * Cp                                        # output
        ),
    )

    out = pl.pallas_call(
        linear_kernel,
        out_shape=jax.ShapeDtypeStruct((Bp, Cp), out_dtype),
        grid=grid,
        in_specs=[
            pl.BlockSpec((tm, K), lambda i, j: (i, 0)),   # x tile (j-invariant)
            pl.BlockSpec((K, tn), lambda i, j: (0, j)),   # W tile (fully resident when tn == Cp)
            pl.BlockSpec((1, tn), lambda i, j: (0, j)),   # bias tile
        ],
        out_specs=pl.BlockSpec((tm, tn), lambda i, j: (i, j)),
        compiler_params=pltpu.CompilerParams(
            dimension_semantics=("parallel", "parallel"),
            vmem_limit_bytes=_VMEM_LIMIT_BYTES,
        ),
        cost_estimate=cost,
    )(xp, wp, b2d)

    if Bp != B or Cp != C:
        out = out[:B, :C]
    return out


if __name__ == "__main__":
    key = jax.random.PRNGKey(0)
    kx, kw, kb = jax.random.split(key, 3)

    B = 16            # batch (small, but >= 16 so the batch grid has 2 steps)
    IN = 256          # Linear in_features (fixed by the module)
    NUM_CLASSES = 128

    x = jax.random.normal(kx, (B, IN), dtype=jnp.float32)
    # Deterministic init mimicking nn.Linear's uniform(-1/sqrt(in), 1/sqrt(in)).
    bound = 1.0 / jnp.sqrt(IN)
    w = jax.random.uniform(kw, (IN, NUM_CLASSES), jnp.float32, -bound, bound)
    b = jax.random.uniform(kb, (NUM_CLASSES,), jnp.float32, -bound, bound)

    y = mlp_forward(x, w, b)
    y = jax.block_until_ready(y)

    # Correctness check against a plain JAX reference (highest-precision matmul).
    y_ref = jnp.dot(x, w, precision=jax.lax.Precision.HIGHEST) + b
    assert y.shape == (B, NUM_CLASSES)
    assert jnp.allclose(y, y_ref, atol=1e-4, rtol=1e-4)

    print("KERNEL_OK")
</pallas_src>

<mosaic_0001>
module attributes {stable_mosaic.version = 11 : i64} {
  func.func @linear_kernel(%arg0: i32, %arg1: i32, %arg2: memref<8x256xf32, #tpu.memory_space<vmem>>, %arg3: memref<256x128xf32, #tpu.memory_space<vmem>>, %arg4: memref<1x128xf32, #tpu.memory_space<vmem>>, %arg5: memref<8x128xf32, #tpu.memory_space<vmem>>) attributes {dimension_semantics = [#tpu.dimension_semantics<parallel>, #tpu.dimension_semantics<parallel>], iteration_bounds = array<i64: 2, 1>, scalar_prefetch = 0 : i64, scratch_operands = 0 : i64, tpu.core_type = #tpu.core_type<tc>, window_params = [{transform_indices = @transform_0, window_bounds = array<i64: 8, 256>}, {transform_indices = @transform_1, window_bounds = array<i64: 256, 128>}, {transform_indices = @transform_2, window_bounds = array<i64: 1, 128>}, {transform_indices = @transform_3, window_bounds = array<i64: 8, 128>}]} {
    %c0 = arith.constant 0 : index
    %c0_0 = arith.constant 0 : index
    %0 = vector.load %arg2[%c0, %c0_0] : memref<8x256xf32, #tpu.memory_space<vmem>>, vector<8x256xf32>
    %c0_1 = arith.constant 0 : index
    %c0_2 = arith.constant 0 : index
    %1 = vector.load %arg3[%c0_1, %c0_2] : memref<256x128xf32, #tpu.memory_space<vmem>>, vector<256x128xf32>
    %cst = arith.constant dense<0.000000e+00> : vector<8x128xf32>
    %2 = tpu.matmul %0, %1, %cst {dimension_numbers = #tpu.dot_dimension_numbers<[1], [0], [0], [1], [0, 0, 1, 1], [], []>} : vector<8x256xf32>, vector<256x128xf32>, vector<8x128xf32> -> vector<8x128xf32>
    %c0_3 = arith.constant 0 : index
    %c0_4 = arith.constant 0 : index
    %3 = vector.load %arg4[%c0_3, %c0_4] : memref<1x128xf32, #tpu.memory_space<vmem>>, vector<1x128xf32>
    %4 = vector.broadcast %3 : vector<1x128xf32> to vector<8x128xf32>
    %5 = arith.addf %2, %4 : vector<8x128xf32>
    %c0_5 = arith.constant 0 : index
    %c0_6 = arith.constant 0 : index
    %6 = vector.load %arg5[%c0_5, %c0_6] : memref<8x128xf32, #tpu.memory_space<vmem>>, vector<8x128xf32>
    tpu.vector_store %arg5[%c0_5, %c0_6], %5 {strides = array<i32>} : memref<8x128xf32, #tpu.memory_space<vmem>>, vector<8x128xf32>,
    return
  }
  func.func @transform_0(%arg0: i32, %arg1: i32) -> (i32, i32) {
    %c0_i32 = arith.constant 0 : i32
    %c0_i32_0 = arith.constant 0 : i32
    return %arg0, %c0_i32 : i32, i32
  }
  func.func @transform_1(%arg0: i32, %arg1: i32) -> (i32, i32) {
    %c0_i32 = arith.constant 0 : i32
    %c0_i32_0 = arith.constant 0 : i32
    return %c0_i32, %arg1 : i32, i32
  }
  func.func @transform_2(%arg0: i32, %arg1: i32) -> (i32, i32) {
    %c0_i32 = arith.constant 0 : i32
    %c0_i32_0 = arith.constant 0 : i32
    return %c0_i32, %arg1 : i32, i32
  }
  func.func @transform_3(%arg0: i32, %arg1: i32) -> (i32, i32) {
    %c0_i32 = arith.constant 0 : i32
    return %arg0, %arg1 : i32, i32
  }
}

</mosaic_0001>

<llo_original>
// kernel: tpu_custom_call.1
$region0: #{tpu_custom_call.1}
  #allocation0 [shape = 'u32[]', space=smem, size = 0x4, offset = 0x4, fixed_abs, tag = 'smem constant byte address 0x4 - core index']
  #allocation1 [shape = 'u32[144,128]{1,0:T(1,128)}', space=vmem, size = 0x12000, scoped, tag = 'internal scratch']
  %s0 = inlined_call_operand.hbm [shape: f32[16,256], index: 0, kind: input, shape index: {}]
  %s1 = inlined_call_operand.hbm [shape: f32[256,128], index: 1, kind: input, shape index: {}]
  %s2 = inlined_call_operand.vmem [shape: f32[1,128], index: 2, kind: input, shape index: {}]
  %s3 = inlined_call_operand.hbm [shape: f32[16,128], index: 3, kind: output, shape index: {}]
  %s4 = sld [smem:[#allocation0]]
  $region53: #{tpu_custom_call.1} parent=0
    _
  %s6 = ssub.s32 1, %s4
  %s7 = scalar_select 0, %s6, %s4
  $region1: #{tpu_custom_call.1} parent=0
    #allocation2 [shape = 'u8[16384]{0}', space=vmem, size = 0x4000, scoped, tag = 'input window, operand 0']
    #allocation3 [shape = 's32[2]{0}', space=sflag, size = 0x8, scoped, tag = 'scoped memory for tpu_custom_call.1']
    #allocation4 [shape = 's32[2]{0}', space=sflag, size = 0x8, scoped, tag = 'scoped memory for tpu_custom_call.1']
    #allocation5 [shape = 'u8[131072]{0}', space=vmem, size = 0x20000, scoped, tag = 'input window, operand 1, single buffered']
    #allocation6 [shape = 's32[1]{0}', space=sflag, size = 0x4, scoped, tag = 'scoped memory for tpu_custom_call.1']
    #allocation7 [shape = 'u8[8192]{0}', space=vmem, size = 0x2000, scoped, tag = 'output window, operand 0']
    %8 = vsyncpa [#allocation3], 0
    %s9 = scalar_lea.sflag [#allocation3], 1
    %10 = vsyncpa %s9, 0
    %11 = vsyncpa [#allocation6], 0
    %12 = vsyncpa [#allocation4], 0
    %s13 = scalar_lea.sflag [#allocation4], 1
    %14 = vsyncpa %s13, 0
    loop: start=0, step=1, limit=4
    $region2: #{tpu_custom_call.1} parent=1 // loop_pre_header
      _
    $region3: #{tpu_custom_call.1} parent=1 // loop_header
      %s16 = sphi 0, %s20
      %p17 = scmp.ge.s32.totalorder %s16, 4
      %s23 = sphi 0, %s35
      %s24 = sphi 0, %s31
      %s25 = sphi 0, %s23
      %s26 = sphi 0, %s24
      %s27 = sphi 0, %s25
      %s28 = sphi 0, %s26
      %s38 = sphi 0, %s40
      %s41 = sphi 0, %s38
      %s42 = sphi 0, %s41
      %s58 = sphi 0, %s42
      %s64 = sphi 0, %s66
      %s67 = sphi 0, %s64
      %s68 = sphi 0, %s67
      %s84 = sphi 0, %s68
      %s90 = sphi 0, %s92
      %s93 = sphi 0, %s90
      %s94 = sphi 0, %s93
      %s110 = sphi 0, %s94
      %s118 = sphi 0, %s120
      %s121 = sphi 0, %s118
      %s122 = sphi 0, %s121
      %s138 = sphi 0, %s122
    $region4: #{tpu_custom_call.1} parent=1 // loop_header_branch
      %19 = sbr.rel (%p17) target = $region8
    $region5: #{tpu_custom_call.1} parent=1 // loop_body
      %s21 = ssub.s32 %s16, 1
      %s22 = ssub.s32 %s16, 2
      %s29 = sadd.s32 1, %s24
      %p30 = scmp.ge.s32.totalorder %s29, 1
      %s31 = scalar_select %p30, 0, %s29
      %s32 = sadd.s32 1, %s23
      %s33 = scalar_select %p30, %s32, %s23
      %p34 = scmp.ge.s32.totalorder %s33, 2
      %s35 = scalar_select %p34, 0, %s33
      %s36 = ssub.s32 %s23, %s35
      %p37 = scmp.eq.s32.totalorder %s36, 0
      %s39 = sadd.s32 %s38, 1
      %s40 = scalar_select %p37, %s38, %s39
      %p43 = pneg %p37
      %p44 = scmp.eq.s32.totalorder %s16, 1
      %p45 = por %p43, %p44
      %p46 = scmp.ne.s32.totalorder %s38, %s41
      %p47 = scmp.eq.s32.totalorder %s16, 0
      %p48 = por %p46, %p47
      %p49 = scmp.ne.s32.totalorder %s38, %s41
      %p50 = scmp.eq.s32.totalorder %s21, 1
      %p51 = por %p49, %p50
      %p52 = scmp.ne.s32.totalorder %s41, %s42
      %p53 = scmp.eq.s32.totalorder %s21, 0
      %p54 = por %p52, %p53
      %p55 = scmp.ne.s32.totalorder %s41, %s42
      %p56 = scmp.eq.s32.totalorder %s22, 1
      %p57 = por %p55, %p56
      %p59 = scmp.ne.s32.totalorder %s42, %s58
      %p60 = scmp.eq.s32.totalorder %s22, 0
      %p61 = por %p59, %p60
      %s62 = ssub.s32 %s24, %s31
      %p63 = scmp.eq.s32.totalorder %s62, 0
      %s65 = sadd.s32 %s64, 1
      %s66 = scalar_select %p63, %s64, %s65
      %p69 = pneg %p63
      %p70 = scmp.eq.s32.totalorder %s16, 1
      %p71 = por %p69, %p70
      %p72 = scmp.ne.s32.totalorder %s64, %s67
      %p73 = scmp.eq.s32.totalorder %s16, 0
      %p74 = por %p72, %p73
      %p75 = scmp.ne.s32.totalorder %s64, %s67
      %p76 = scmp.eq.s32.totalorder %s21, 1
      %p77 = por %p75, %p76
      %p78 = scmp.ne.s32.totalorder %s67, %s68
      %p79 = scmp.eq.s32.totalorder %s21, 0
      %p80 = por %p78, %p79
      %p81 = scmp.ne.s32.totalorder %s67, %s68
      %p82 = scmp.eq.s32.totalorder %s22, 1
      %p83 = por %p81, %p82
      %p85 = scmp.ne.s32.totalorder %s68, %s84
      %p86 = scmp.eq.s32.totalorder %s22, 0
      %p87 = por %p85, %p86
      %s88 = ssub.s32 %s24, %s31
      %p89 = scmp.eq.s32.totalorder %s88, 0
      %s91 = sadd.s32 %s90, 1
      %s92 = scalar_select %p89, %s90, %s91
      %p95 = pneg %p89
      %p96 = scmp.eq.s32.totalorder %s16, 1
      %p97 = por %p95, %p96
      %p98 = scmp.ne.s32.totalorder %s90, %s93
      %p99 = scmp.eq.s32.totalorder %s16, 0
      %p100 = por %p98, %p99
      %p101 = scmp.ne.s32.totalorder %s90, %s93
      %p102 = scmp.eq.s32.totalorder %s21, 1
      %p103 = por %p101, %p102
      %p104 = scmp.ne.s32.totalorder %s93, %s94
      %p105 = scmp.eq.s32.totalorder %s21, 0
      %p106 = por %p104, %p105
      %p107 = scmp.ne.s32.totalorder %s93, %s94
      %p108 = scmp.eq.s32.totalorder %s22, 1
      %p109 = por %p107, %p108
      %p111 = scmp.ne.s32.totalorder %s94, %s110
      %p112 = scmp.eq.s32.totalorder %s22, 0
      %p113 = por %p111, %p112
      %s114 = ssub.s32 %s23, %s35
      %s115 = ssub.s32 %s24, %s31
      %s116 = sor.u32 %s114, %s115
      %p117 = scmp.eq.s32.totalorder %s116, 0
      %s119 = sadd.s32 %s118, 1
      %s120 = scalar_select %p117, %s118, %s119
      %p123 = pneg %p117
      %p124 = scmp.eq.s32.totalorder %s16, 1
      %p125 = por %p123, %p124
      %p126 = scmp.ne.s32.totalorder %s118, %s121
      %p127 = scmp.eq.s32.totalorder %s16, 0
      %p128 = por %p126, %p127
      %p129 = scmp.ne.s32.totalorder %s118, %s121
      %p130 = scmp.eq.s32.totalorder %s21, 1
      %p131 = por %p129, %p130
      %p132 = scmp.ne.s32.totalorder %s121, %s122
      %p133 = scmp.eq.s32.totalorder %s21, 0
      %p134 = por %p132, %p133
      %p135 = scmp.ne.s32.totalorder %s121, %s122
      %p136 = scmp.eq.s32.totalorder %s22, 1
      %p137 = por %p135, %p136
      %p139 = scmp.ne.s32.totalorder %s122, %s138
      %p140 = scmp.eq.s32.totalorder %s22, 0
      %p141 = por %p139, %p140
      %p142 = scmp.le.s32.totalorder 1, %s16
      %p143 = scmp.lt.s32.totalorder %s16, 3
      %p144 = pnand %p142, %p143
      %p145 = pneg %p144
      // Predicated region
      $region9: #{tpu_custom_call.1} parent=5 // pred_check
        _
      $region10: #{tpu_custom_call.1} parent=5 // pred_check_branch
        %147 = sbr.rel (%p144) target = $region12
      $region11: #{tpu_custom_call.1} parent=5 // pred_region
        %s148 = ssub.s32 %s16, 1
        // Predicated region
        $region13: #{tpu_custom_call.1} parent=11 // pred_check
          %p149 = pneg %p80
        $region14: #{tpu_custom_call.1} parent=11 // pred_check_branch
          %151 = sbr.rel (%p149) target = $region16
        $region15: #{tpu_custom_call.1} parent=11 // pred_region
          %s153 = ssub.s32 4096, 4096
          %154 = vsyncadd [#allocation6], %s153
          %s155 = smul.addr %s26, 128
          %s156 = scalar_lea.hbm %s1, %s155
          %s157 = sshll.u32 [#allocation5], 4
          %s158 = int_to_ptr.vmem [resolvable:$true] %s157
          %163 = dma.hbm_to_vmem [thread:$0]  %s156, 4096, %s158, [#allocation6], 128, 128, 8
        $region16: #{tpu_custom_call.1} parent=11 // pred_fallthru
          _
        // Predicated region
        $region17: #{tpu_custom_call.1} parent=11 // pred_check
          %p164 = pneg %p106
        $region18: #{tpu_custom_call.1} parent=11 // pred_check_branch
          %166 = sbr.rel (%p164) target = $region20
        $region19: #{tpu_custom_call.1} parent=11 // pred_region
          %p167 = scmp.lt.s32.totalorder %s26, 0
          %s168 = scalar_select %p167, %s26, 0
          %s169 = scalar_lea.vmem %s2, %s168
        $region20: #{tpu_custom_call.1} parent=11 // pred_fallthru
          _
      $region12: #{tpu_custom_call.1} parent=5 // pred_fallthru
        _
      %p170 = scmp.lt.s32.totalorder %s16, 2
      // Predicated region
      $region21: #{tpu_custom_call.1} parent=5 // pred_check
        %p171 = pneg %p170
      $region22: #{tpu_custom_call.1} parent=5 // pred_check_branch
        %173 = sbr.rel (%p171) target = $region24
      $region23: #{tpu_custom_call.1} parent=5 // pred_region
        // Predicated region
        $region25: #{tpu_custom_call.1} parent=23 // pred_check
          %p174 = pneg %p48
        $region26: #{tpu_custom_call.1} parent=23 // pred_check_branch
          %176 = sbr.rel (%p174) target = $region28
        $region27: #{tpu_custom_call.1} parent=23 // pred_region
          %s177 = sand.u32 %s38, 1
          %s178 = scalar_lea.sflag [#allocation3], %s177
          %s179 = sand.u32 %s38, 1
          %s180 = smul.addr %s179, 16
          %s181 = scalar_lea.vmem [#allocation2], %s180
          %s183 = ssub.s32 256, 256
          %184 = vsyncadd %s178, %s183
          %s185 = smul.addr %s23, 2
          %s186 = smul.addr %s185, 128
          %s187 = scalar_lea.hbm %s0, %s186
          %s189 = sshll.u32 %s181, 4
          %s190 = int_to_ptr.vmem [resolvable:$true] %s189
          %192 = dma.hbm_to_vmem [thread:$0]  %s187, 256, %s190, %s178
        $region28: #{tpu_custom_call.1} parent=23 // pred_fallthru
          _
      $region24: #{tpu_custom_call.1} parent=5 // pred_fallthru
        _
      %p193 = scmp.le.s32.totalorder 1, %s16
      %p194 = scmp.lt.s32.totalorder %s16, 3
      %p195 = pnand %p193, %p194
      %p196 = pneg %p195
      // Predicated region
      $region29: #{tpu_custom_call.1} parent=5 // pred_check
        _
      $region30: #{tpu_custom_call.1} parent=5 // pred_check_branch
        %198 = sbr.rel (%p195) target = $region32
      $region31: #{tpu_custom_call.1} parent=5 // pred_region
        %s199 = ssub.s32 %s16, 1
        %s200 = sand.u32 %s41, 1
        %s201 = scalar_lea.sflag [#allocation3], %s200
        %s202 = sand.u32 %s41, 1
        %s203 = smul.addr %s202, 16
        %s204 = scalar_lea.vmem [#allocation2], %s203
        // Predicated region
        $region33: #{tpu_custom_call.1} parent=31 // pred_check
          %p205 = pneg %p54
        $region34: #{tpu_custom_call.1} parent=31 // pred_check_branch
          %207 = sbr.rel (%p205) target = $region36
        $region35: #{tpu_custom_call.1} parent=31 // pred_region
          %208 = dma.done %s201, 256
        $region36: #{tpu_custom_call.1} parent=31 // pred_fallthru
          _
        // Predicated region
        $region37: #{tpu_custom_call.1} parent=31 // pred_check
          %p209 = pneg %p80
        $region38: #{tpu_custom_call.1} parent=31 // pred_check_branch
          %211 = sbr.rel (%p209) target = $region40
        $region39: #{tpu_custom_call.1} parent=31 // pred_region
          %212 = dma.done [#allocation6], 4096
        $region40: #{tpu_custom_call.1} parent=31 // pred_fallthru
          _
        %s213 = sand.u32 %s41, 1
        %s214 = scalar_lea.sflag [#allocation3], %s213
        %s215 = sand.u32 %s41, 1
        %s216 = smul.addr %s215, 16
        %s217 = scalar_lea.vmem [#allocation2], %s216
        %p218 = pneg %p54
        %p219 = pneg %p51
        %p220 = pneg %p80
        %p221 = pneg %p77
        %p222 = scmp.lt.s32.totalorder %s26, 0
        %s223 = scalar_select %p222, %s26, 0
        %s224 = scalar_lea.vmem %s2, %s223
        %p225 = pneg %p106
        %p226 = pneg %p103
        %p227 = pneg %p134
        %p228 = pneg %p131
        %s229 = sand.u32 %s121, 1
        %s230 = scalar_lea.sflag [#allocation4], %s229
        %s231 = sand.u32 %s121, 1
        %s232 = smul.addr %s231, 8
        %s233 = scalar_lea.vmem [#allocation7], %s232
        %p234 = scmp.lt.s32.totalorder %s26, 0
        %s235 = scalar_select %p234, %s26, 0
        %s236 = scalar_lea.vmem %s2, %s235
        %v237 = vld [vmem:[%s204] sm:$0xff]
        %v238 = vld [vmem:[%s204 + $0x8] sm:$0xff]
        %v239 = vld [vmem:[#allocation5] sm:$0xff]
        %v240 = vld [vmem:[#allocation5 + $0x8] sm:$0xff]
        %v241 = vld [vmem:[#allocation5 + $0x10] sm:$0xff]
        %v242 = vld [vmem:[#allocation5 + $0x18] sm:$0xff]
        %v243 = vld [vmem:[#allocation5 + $0x20] sm:$0xff]
        %v244 = vld [vmem:[#allocation5 + $0x28] sm:$0xff]
        %v245 = vld [vmem:[#allocation5 + $0x30] sm:$0xff]
        %v246 = vld [vmem:[#allocation5 + $0x38] sm:$0xff]
        %v247 = vld [vmem:[#allocation5 + $0x40] sm:$0xff]
        %v248 = vld [vmem:[#allocation5 + $0x48] sm:$0xff]
        %v249 = vld [vmem:[#allocation5 + $0x50] sm:$0xff]
        %v250 = vld [vmem:[#allocation5 + $0x58] sm:$0xff]
        %v251 = vld [vmem:[#allocation5 + $0x60] sm:$0xff]
        %v252 = vld [vmem:[#allocation5 + $0x68] sm:$0xff]
        %v253 = vld [vmem:[#allocation5 + $0x70] sm:$0xff]
        %v254 = vld [vmem:[#allocation5 + $0x78] sm:$0xff]
        %v255 = vld [vmem:[#allocation5 + $0x80] sm:$0xff]
        %v256 = vld [vmem:[#allocation5 + $0x88] sm:$0xff]
        %v257 = vld [vmem:[#allocation5 + $0x90] sm:$0xff]
        %v258 = vld [vmem:[#allocation5 + $0x98] sm:$0xff]
        %v259 = vld [vmem:[#allocation5 + $0xa0] sm:$0xff]
        %v260 = vld [vmem:[#allocation5 + $0xa8] sm:$0xff]
        %v261 = vld [vmem:[#allocation5 + $0xb0] sm:$0xff]
        %v262 = vld [vmem:[#allocation5 + $0xb8] sm:$0xff]
        %v263 = vld [vmem:[#allocation5 + $0xc0] sm:$0xff]
        %v264 = vld [vmem:[#allocation5 + $0xc8] sm:$0xff]
        %v265 = vld [vmem:[#allocation5 + $0xd0] sm:$0xff]
        %v266 = vld [vmem:[#allocation5 + $0xd8] sm:$0xff]
        %v267 = vld [vmem:[#allocation5 + $0xe0] sm:$0xff]
        %v268 = vld [vmem:[#allocation5 + $0xe8] sm:$0xff]
        %v269 = vld [vmem:[#allocation5 + $0xf0] sm:$0xff]
        %v270 = vld [vmem:[#allocation5 + $0xf8] sm:$0xff]
        %v271 = vld [vmem:[%s236] sm:$0x1]
        %v273 = vlaneseq
        %v274 = vshrl.u32 %v273, 7
        %v275 = vsub.s32 0, %v274
        %v276 = vrot.slane %v271, %v275
        %278 = vmatprep.subr.mxu0 0.0
        %279 = vmatpush1.msra.mxu0 %v254
        %280 = vmatprep.subr.mxu0 0.0
        %281 = vmatpush1.msra.mxu0 %v253
        %282 = vmatprep.subr.mxu0 0.0
        %283 = vmatpush1.msra.mxu0 %v252
        %284 = vmatprep.subr.mxu0 0.0
        %285 = vmatpush1.msra.mxu0 %v251
        %286 = vmatprep.subr.mxu0 0.0
        %287 = vmatpush1.msra.mxu0 %v250
        %288 = vmatprep.subr.mxu0 0.0
        %289 = vmatpush1.msra.mxu0 %v249
        %290 = vmatprep.subr.mxu0 0.0
        %291 = vmatpush1.msra.mxu0 %v248
        %292 = vmatprep.subr.mxu0 0.0
        %293 = vmatpush1.msra.mxu0 %v247
        %294 = vmatprep.subr.mxu0 0.0
        %295 = vmatpush1.msra.mxu0 %v246
        %296 = vmatprep.subr.mxu0 0.0
        %297 = vmatpush1.msra.mxu0 %v245
        %298 = vmatprep.subr.mxu0 0.0
        %299 = vmatpush1.msra.mxu0 %v244
        %300 = vmatprep.subr.mxu0 0.0
        %301 = vmatpush1.msra.mxu0 %v243
        %302 = vmatprep.subr.mxu0 0.0
        %303 = vmatpush1.msra.mxu0 %v242
        %304 = vmatprep.subr.mxu0 0.0
        %305 = vmatpush1.msra.mxu0 %v241
        %306 = vmatprep.subr.mxu0 0.0
        %307 = vmatpush1.msra.mxu0 %v240
        %308 = vmatprep.subr.mxu0 0.0
        %309 = vmatpush1.msra.mxu0 %v239
        %310 = vmatprep.subr.mxu0 0.0
        %311 = vmatpush2.msra.mxu0 %v270
        %312 = vmatprep.subr.mxu0 0.0
        %313 = vmatpush2.msra.mxu0 %v269
        %314 = vmatprep.subr.mxu0 0.0
        %315 = vmatpush2.msra.mxu0 %v268
        %316 = vmatprep.subr.mxu0 0.0
        %317 = vmatpush2.msra.mxu0 %v267
        %318 = vmatprep.subr.mxu0 0.0
        %319 = vmatpush2.msra.mxu0 %v266
        %320 = vmatprep.subr.mxu0 0.0
        %321 = vmatpush2.msra.mxu0 %v265
        %322 = vmatprep.subr.mxu0 0.0
        %323 = vmatpush2.msra.mxu0 %v264
        %324 = vmatprep.subr.mxu0 0.0
        %325 = vmatpush2.msra.mxu0 %v263
        %326 = vmatprep.subr.mxu0 0.0
        %327 = vmatpush2.msra.mxu0 %v262
        %328 = vmatprep.subr.mxu0 0.0
        %329 = vmatpush2.msra.mxu0 %v261
        %330 = vmatprep.subr.mxu0 0.0
        %331 = vmatpush2.msra.mxu0 %v260
        %332 = vmatprep.subr.mxu0 0.0
        %333 = vmatpush2.msra.mxu0 %v259
        %334 = vmatprep.subr.mxu0 0.0
        %335 = vmatpush2.msra.mxu0 %v258
        %336 = vmatprep.subr.mxu0 0.0
        %337 = vmatpush2.msra.mxu0 %v257
        %338 = vmatprep.subr.mxu0 0.0
        %339 = vmatpush2.msra.mxu0 %v256
        %340 = vmatprep.subr.mxu0 0.0
        %341 = vmatpush2.msra.mxu0 %v255
        %342 = vmatprep.mubr.f32.mxu0 %v238
        %343 = vmatmul.mubr.f32.gmra.mxu0 %v237
        %v344 = vpop.f32.mrf.mxu0
        %v345 = vadd.f32 %v276, %v344
        %v346 = vpop.f32.mrf.mxu0
        %347 = vdwg.mxu0
        %348 = vst [vmem:[%s233] sm:$0xff] %v345
        %s349 = sand.u32 %s121, 1
        %s350 = scalar_lea.sflag [#allocation4], %s349
        %s351 = sand.u32 %s121, 1
        %s352 = smul.addr %s351, 8
        %s353 = scalar_lea.vmem [#allocation7], %s352
        // Predicated region
        $region41: #{tpu_custom_call.1} parent=31 // pred_check
          %p354 = pneg %p131
        $region42: #{tpu_custom_call.1} parent=31 // pred_check_branch
          %356 = sbr.rel (%p354) target = $region44
        $region43: #{tpu_custom_call.1} parent=31 // pred_region
          %s358 = ssub.s32 128, 128
          %359 = vsyncadd %s350, %s358
          %s360 = sadd.s32 %s26, %s25
          %s361 = smul.addr %s360, 128
          %s362 = scalar_lea.hbm %s3, %s361
          %s364 = sshll.u32 %s353, 4
          %s365 = int_to_ptr.vmem [resolvable:$true] %s364
          %367 = dma.vmem_to_hbm [thread:$0]  %s365, 128, %s362, %s350
        $region44: #{tpu_custom_call.1} parent=31 // pred_fallthru
          _
      $region32: #{tpu_custom_call.1} parent=5 // pred_fallthru
        _
      %p368 = scmp.le.s32.totalorder 2, %s16
      // Predicated region
      $region45: #{tpu_custom_call.1} parent=5 // pred_check
        %p369 = pneg %p368
      $region46: #{tpu_custom_call.1} parent=5 // pred_check_branch
        %371 = sbr.rel (%p369) target = $region48
      $region47: #{tpu_custom_call.1} parent=5 // pred_region
        %s372 = ssub.s32 %s16, 2
        // Predicated region
        $region49: #{tpu_custom_call.1} parent=47 // pred_check
          %p373 = pneg %p137
        $region50: #{tpu_custom_call.1} parent=47 // pred_check_branch
          %375 = sbr.rel (%p373) target = $region52
        $region51: #{tpu_custom_call.1} parent=47 // pred_region
          %s376 = sand.u32 %s122, 1
          %s377 = scalar_lea.sflag [#allocation4], %s376
          %s378 = sand.u32 %s122, 1
          %s379 = smul.addr %s378, 8
          %s380 = scalar_lea.vmem [#allocation7], %s379
          %381 = dma.done %s377, 128
        $region52: #{tpu_custom_call.1} parent=47 // pred_fallthru
          _
      $region48: #{tpu_custom_call.1} parent=5 // pred_fallthru
        _
    $region6: #{tpu_custom_call.1} parent=1 // loop_footer
      %s20 = sadd.s32 1, %s16
    $region7: #{tpu_custom_call.1} parent=1 // loop_footer_branch
      %15 = sbr.rel target = $region3
    $region8: #{tpu_custom_call.1} parent=1 // loop_exit
      _
    %382 = vsyncpa [#allocation3], 1
    %s383 = scalar_lea.sflag [#allocation3], 1
    %384 = vsyncpa %s383, 1
    %385 = vsyncpa [#allocation6], 1
    %386 = vsyncpa [#allocation4], 1
    %s387 = scalar_lea.sflag [#allocation4], 1
    %388 = vsyncpa %s387, 1

</llo_original>
